<compile_context>
chip_gen: v7x
topology: tpu7x:2x2x1
jax: 0.10.0
libtpu: 0.0.40
codegen_flags: <defaults>
</compile_context>

<pallas_src>
import functools

import jax
import jax.numpy as jnp
from jax.experimental import pallas as pl
from jax.experimental.pallas import tpu as pltpu


def _round_up(x, m):
    return (x + m - 1) // m * m


def _ffn_kernel(x_ref, w1_ref, b1_ref, w2_ref, b2_ref, g_ref, beta_ref,
                o_ref, acc_ref, *, eps, inv_d, d_model):
    # x_ref: (tm, d_pad)   w1: (d_pad, fk)   w2: (fk, d_pad)   acc: (tm, d_pad) f32
    k = pl.program_id(1)

    @pl.when(k == 0)
    def _():
        acc_ref[...] = jnp.zeros_like(acc_ref)

    x = x_ref[...]                                   # native / bf16 -> MXU directly

    # linear1 chunk + ReLU (MXU, f32 accumulate; bias kept in f32)
    h = jnp.dot(x, w1_ref[...], preferred_element_type=jnp.float32)
    h = jnp.maximum(h + b1_ref[...], 0.0)

    # partial linear2 chunk, accumulated in f32 VMEM scratch
    acc_ref[...] += jnp.dot(h.astype(w2_ref.dtype), w2_ref[...],
                            preferred_element_type=jnp.float32)

    @pl.when(k == pl.num_programs(1) - 1)
    def _():
        # residual add + bias in f32.  Padded feature lanes of z are exactly
        # zero (zero-padded x, w2 columns, b2), so the mean over the padded
        # width equals the mean over the true width (divide by true d_model).
        z = x.astype(jnp.float32) + acc_ref[...] + b2_ref[...]
        mean = jnp.sum(z, axis=-1, keepdims=True) * inv_d

        # Two-pass (centered) variance; mask padded lanes since (z - mean)
        # is -mean there, not zero.
        zc = z - mean
        d_pad = z.shape[-1]
        if d_pad != d_model:
            lane = jax.lax.broadcasted_iota(jnp.int32, (1, d_pad), 1)
            zc = jnp.where(lane < d_model, zc, 0.0)
        var = jnp.sum(zc * zc, axis=-1, keepdims=True) * inv_d
        zn = zc * jax.lax.rsqrt(var + eps)

        o_ref[...] = (zn * g_ref[...] + beta_ref[...]).astype(o_ref.dtype)


def ffn_layer(tgt, w1, b1, w2, b2, gamma, beta, *,
              eps=1e-5, matmul_dtype=None, force_fk=None):
    """forward_post: LayerNorm(tgt + linear2(relu(linear1(tgt))))."""
    seq, bsz, d_model = tgt.shape
    ffn = w1.shape[1]
    n_rows = seq * bsz

    # Lane-dense padding of the feature axes (multiples of 128).
    d_pad = _round_up(d_model, 128)
    f_pad = _round_up(ffn, 128)

    # MXU operand dtypes.  matmul_dtype=jnp.bfloat16 is the fast path on all
    # generations (f32 matmul is a multi-pass MXU path); accumulation and
    # LayerNorm stay in f32 either way.
    if matmul_dtype is not None:
        x_dtype = w_dtype = jnp.dtype(matmul_dtype)
    else:
        x_dtype = jnp.dtype(tgt.dtype)
        w_dtype = jnp.dtype(w1.dtype)
    x_bytes = x_dtype.itemsize
    w_bytes = w_dtype.itemsize
    out_dtype = tgt.dtype

    # ---- VMEM budget ------------------------------------------------------
    try:
        vmem_cap = int(pltpu.get_tpu_info().vmem_capacity_bytes)
    except Exception:
        vmem_cap = 64 * 1024 * 1024          # conservative (v7x per-TC)
    vmem_cap = min(vmem_cap, 128 * 1024 * 1024)   # per-TensorCore upper bound
    budget = int(vmem_cap * 0.80)

    def footprint(tm, fk):
        # Everything counted double-buffered (consistent with the pipeline).
        weights = 2 * 2 * d_pad * fk * w_bytes                    # w1 + w2 chunks
        small = 2 * (fk + 3 * d_pad) * 4                          # b1,b2,gamma,beta
        io = 2 * tm * d_pad * (x_bytes + jnp.dtype(out_dtype).itemsize)
        acc = tm * d_pad * 4                                      # f32 accumulator
        interm = tm * fk * 4 + 3 * tm * d_pad * 4                 # h + LN temps
        return weights + small + io + acc + interm

    # fk candidates: divisors of f_pad that are multiples of 128, descending.
    m = f_pad // 128
    fk_cands = [128 * d for d in sorted(
        (d for d in range(1, m + 1) if m % d == 0), reverse=True)]

    # Prefer the largest 128-multiple row tile; for that tile take the largest
    # ffn chunk (ideally resident weights, fk == f_pad) that fits the budget.
    tm, fk = 128, fk_cands[-1]
    done = False
    for tm_c in (512, 256, 128):
        for fk_c in fk_cands:
            if footprint(tm_c, fk_c) <= budget:
                tm, fk = tm_c, fk_c
                done = True
                break
        if done:
            break

    if force_fk is not None:                 # debug / test knob
        assert force_fk % 128 == 0 and f_pad % force_fk == 0
        fk = force_fk

    # Keep tm a multiple of 128 but never wider than the 128-padded row count;
    # then target >= 4 row-tile grid steps so DMA pipelining has work and both
    # v7x TensorCores get row tiles.
    tm = min(tm, _round_up(n_rows, 128))
    while tm > 128 and _round_up(n_rows, tm) // tm < 4:
        tm //= 2
    rows_pad = _round_up(n_rows, tm)
    ni = rows_pad // tm
    nk = f_pad // fk

    vmem_limit = min(vmem_cap - 4 * 1024 * 1024,
                     max(32 * 1024 * 1024, int(1.2 * footprint(tm, fk))))

    # ---- Pad / cast operands (zero padding; mathematically inert) ----------
    x2d = jnp.pad(tgt.reshape(n_rows, d_model),
                  ((0, rows_pad - n_rows), (0, d_pad - d_model))).astype(x_dtype)
    w1p = jnp.pad(w1, ((0, d_pad - d_model), (0, f_pad - ffn))).astype(w_dtype)
    w2p = jnp.pad(w2, ((0, f_pad - ffn), (0, d_pad - d_model))).astype(w_dtype)
    b1p = jnp.pad(b1, (0, f_pad - ffn)).astype(jnp.float32).reshape(1, f_pad)
    b2p = jnp.pad(b2, (0, d_pad - d_model)).astype(jnp.float32).reshape(1, d_pad)
    gp = jnp.pad(gamma, (0, d_pad - d_model)).astype(jnp.float32).reshape(1, d_pad)
    bp = jnp.pad(beta, (0, d_pad - d_model)).astype(jnp.float32).reshape(1, d_pad)

    kernel = functools.partial(_ffn_kernel, eps=float(eps),
                               inv_d=1.0 / float(d_model), d_model=d_model)

    # Weight HBM traffic is re-paid per row tile only when streaming (nk > 1).
    weight_bytes = 2 * d_pad * f_pad * w_bytes * (ni if nk > 1 else 1)
    cost = pl.CostEstimate(
        flops=int(4.0 * rows_pad * d_pad * f_pad),
        transcendentals=0,
        bytes_accessed=int(weight_bytes + 2 * rows_pad * d_pad * x_bytes))

    out2d = pl.pallas_call(
        kernel,
        out_shape=jax.ShapeDtypeStruct((rows_pad, d_pad), out_dtype),
        grid_spec=pltpu.PrefetchScalarGridSpec(
            num_scalar_prefetch=0,
            grid=(ni, nk),
            in_specs=[
                pl.BlockSpec((tm, d_pad), lambda i, k: (i, 0)),   # x tile (resident over k)
                pl.BlockSpec((d_pad, fk), lambda i, k: (0, k)),   # w1 chunk
                pl.BlockSpec((1, fk),     lambda i, k: (0, k)),   # b1 chunk
                pl.BlockSpec((fk, d_pad), lambda i, k: (k, 0)),   # w2 chunk
                pl.BlockSpec((1, d_pad),  lambda i, k: (0, 0)),   # b2
                pl.BlockSpec((1, d_pad),  lambda i, k: (0, 0)),   # gamma
                pl.BlockSpec((1, d_pad),  lambda i, k: (0, 0)),   # beta
            ],
            out_specs=pl.BlockSpec((tm, d_pad), lambda i, k: (i, 0)),
            scratch_shapes=[pltpu.VMEM((tm, d_pad), jnp.float32)],
        ),
        compiler_params=pltpu.CompilerParams(
            dimension_semantics=("parallel", "arbitrary"),
            vmem_limit_bytes=vmem_limit),
        cost_estimate=cost,
    )(x2d, w1p, b1p, w2p, b2p, gp, bp)

    return out2d[:n_rows, :d_model].reshape(seq, bsz, d_model)


def _xavier_uniform(key, shape):
    fan_in, fan_out = shape
    bound = (6.0 / (fan_in + fan_out)) ** 0.5
    return jax.random.uniform(key, shape, jnp.float32, -bound, bound)


if __name__ == "__main__":
    # Small, module-consistent shapes: (seq, batch, d_model), hidden dim_feedforward.
    seq, bsz, d_model, dim_ff = 8, 2, 32, 256

    key = jax.random.PRNGKey(0)
    k_x, k_w1, k_b1, k_w2, k_b2 = jax.random.split(key, 5)

    tgt = jax.random.normal(k_x, (seq, bsz, d_model), jnp.float32)

    # Parameters (xavier_uniform on matrices as in _reset_parameters)
    w1 = _xavier_uniform(k_w1, (d_model, dim_ff))        # linear1: d_model -> dim_ff
    b1 = jax.random.uniform(k_b1, (dim_ff,), jnp.float32,
                            -1.0 / d_model ** 0.5, 1.0 / d_model ** 0.5)
    w2 = _xavier_uniform(k_w2, (dim_ff, d_model))        # linear2: dim_ff -> d_model
    b2 = jax.random.uniform(k_b2, (d_model,), jnp.float32,
                            -1.0 / dim_ff ** 0.5, 1.0 / dim_ff ** 0.5)
    gamma = jnp.ones((d_model,), jnp.float32)            # LayerNorm weight
    beta = jnp.zeros((d_model,), jnp.float32)            # LayerNorm bias

    # Pure-JAX reference (forward_post semantics).
    h = jnp.maximum(tgt @ w1 + b1, 0.0)
    y = h @ w2 + b2
    z = tgt + y
    mu = z.mean(-1, keepdims=True)
    var = ((z - mu) ** 2).mean(-1, keepdims=True)
    ref = (z - mu) / jnp.sqrt(var + 1e-5) * gamma + beta

    # 1) Default path (resident weights, native f32 matmuls).
    out = ffn_layer(tgt, w1, b1, w2, b2, gamma, beta)
    jax.block_until_ready(out)
    assert jnp.allclose(out, ref, atol=1e-4, rtol=1e-4), "mismatch (default path)"

    # 2) Streaming path: force the ffn-dim reduction grid axis (nk = 2).
    out_stream = ffn_layer(tgt, w1, b1, w2, b2, gamma, beta, force_fk=128)
    jax.block_until_ready(out_stream)
    assert jnp.allclose(out_stream, ref, atol=1e-4, rtol=1e-4), "mismatch (streaming path)"

    # 3) bf16 MXU fast path (opt-in); loose tolerance for bf16 operands.
    out_bf16 = ffn_layer(tgt, w1, b1, w2, b2, gamma, beta,
                         matmul_dtype=jnp.bfloat16)
    jax.block_until_ready(out_bf16)
    assert jnp.allclose(out_bf16, ref, atol=1e-1, rtol=1e-1), "mismatch (bf16 path)"

    print("KERNEL_OK")
</pallas_src>

<mosaic_0001>
module attributes {stable_mosaic.version = 11 : i64} {
  func.func @_ffn_kernel(%arg0: i32, %arg1: i32, %arg2: memref<128x128xf32, #tpu.memory_space<vmem>>, %arg3: memref<128x256xf32, #tpu.memory_space<vmem>>, %arg4: memref<1x256xf32, #tpu.memory_space<vmem>>, %arg5: memref<256x128xf32, #tpu.memory_space<vmem>>, %arg6: memref<1x128xf32, #tpu.memory_space<vmem>>, %arg7: memref<1x128xf32, #tpu.memory_space<vmem>>, %arg8: memref<1x128xf32, #tpu.memory_space<vmem>>, %arg9: memref<128x128xf32, #tpu.memory_space<vmem>>, %arg10: memref<128x128xf32, #tpu.memory_space<vmem>>) attributes {dimension_semantics = [#tpu.dimension_semantics<parallel>, #tpu.dimension_semantics<arbitrary>], iteration_bounds = array<i64: 1, 1>, scalar_prefetch = 0 : i64, scratch_operands = 1 : i64, tpu.core_type = #tpu.core_type<tc>, window_params = [{transform_indices = @transform_0, window_bounds = array<i64: 128, 128>}, {transform_indices = @transform_1, window_bounds = array<i64: 128, 256>}, {transform_indices = @transform_2, window_bounds = array<i64: 1, 256>}, {transform_indices = @transform_3, window_bounds = array<i64: 256, 128>}, {pipeline_mode = #tpu.pipeline_mode<synchronous>, transform_indices = @transform_4, window_bounds = array<i64: 1, 128>}, {pipeline_mode = #tpu.pipeline_mode<synchronous>, transform_indices = @transform_5, window_bounds = array<i64: 1, 128>}, {pipeline_mode = #tpu.pipeline_mode<synchronous>, transform_indices = @transform_6, window_bounds = array<i64: 1, 128>}, {transform_indices = @transform_7, window_bounds = array<i64: 128, 128>}]} {
    %c0_i32 = arith.constant 0 : i32
    %0 = arith.cmpi eq, %arg1, %c0_i32 : i32
    %1 = arith.extui %0 : i1 to i32
    %c0_i32_0 = arith.constant 0 : i32
    %2 = arith.cmpi ne, %1, %c0_i32_0 : i32
    scf.if %2 {
      %cst_16 = arith.constant 0.000000e+00 : f32
      %19 = vector.broadcast %cst_16 : f32 to vector<128x128xf32>
      %c0_17 = arith.constant 0 : index
      %c0_18 = arith.constant 0 : index
      %20 = vector.load %arg10[%c0_17, %c0_18] : memref<128x128xf32, #tpu.memory_space<vmem>>, vector<128x128xf32>
      tpu.vector_store %arg10[%c0_17, %c0_18], %19 {strides = array<i32>} : memref<128x128xf32, #tpu.memory_space<vmem>>, vector<128x128xf32>,
    } else {
    }
    %c0 = arith.constant 0 : index
    %c0_1 = arith.constant 0 : index
    %3 = vector.load %arg2[%c0, %c0_1] : memref<128x128xf32, #tpu.memory_space<vmem>>, vector<128x128xf32>
    %c0_2 = arith.constant 0 : index
    %c0_3 = arith.constant 0 : index
    %4 = vector.load %arg3[%c0_2, %c0_3] : memref<128x256xf32, #tpu.memory_space<vmem>>, vector<128x256xf32>
    %cst = arith.constant dense<0.000000e+00> : vector<128x256xf32>
    %5 = tpu.matmul %3, %4, %cst {dimension_numbers = #tpu.dot_dimension_numbers<[1], [0], [0], [1], [0, 0, 1, 1], [], []>} : vector<128x128xf32>, vector<128x256xf32>, vector<128x256xf32> -> vector<128x256xf32>
    %c0_4 = arith.constant 0 : index
    %c0_5 = arith.constant 0 : index
    %6 = vector.load %arg4[%c0_4, %c0_5] : memref<1x256xf32, #tpu.memory_space<vmem>>, vector<1x256xf32>
    %7 = vector.broadcast %6 : vector<1x256xf32> to vector<128x256xf32>
    %8 = arith.addf %5, %7 : vector<128x256xf32>
    %cst_6 = arith.constant 0.000000e+00 : f32
    %9 = vector.broadcast %cst_6 : f32 to vector<128x256xf32>
    %10 = arith.maximumf %8, %9 : vector<128x256xf32>
    %c0_7 = arith.constant 0 : index
    %c0_8 = arith.constant 0 : index
    %11 = vector.load %arg10[%c0_7, %c0_8] : memref<128x128xf32, #tpu.memory_space<vmem>>, vector<128x128xf32>
    %c0_9 = arith.constant 0 : index
    %c0_10 = arith.constant 0 : index
    %12 = vector.load %arg5[%c0_9, %c0_10] : memref<256x128xf32, #tpu.memory_space<vmem>>, vector<256x128xf32>
    %cst_11 = arith.constant dense<0.000000e+00> : vector<128x128xf32>
    %13 = tpu.matmul %10, %12, %cst_11 {dimension_numbers = #tpu.dot_dimension_numbers<[1], [0], [0], [1], [0, 0, 1, 1], [], []>} : vector<128x256xf32>, vector<256x128xf32>, vector<128x128xf32> -> vector<128x128xf32>
    %14 = arith.addf %11, %13 : vector<128x128xf32>
    %c0_12 = arith.constant 0 : index
    %c0_13 = arith.constant 0 : index
    %15 = vector.load %arg10[%c0_12, %c0_13] : memref<128x128xf32, #tpu.memory_space<vmem>>, vector<128x128xf32>
    tpu.vector_store %arg10[%c0_12, %c0_13], %14 {strides = array<i32>} : memref<128x128xf32, #tpu.memory_space<vmem>>, vector<128x128xf32>,
    %c0_i32_14 = arith.constant 0 : i32
    %16 = arith.cmpi eq, %arg1, %c0_i32_14 : i32
    %17 = arith.extui %16 : i1 to i32
    %c0_i32_15 = arith.constant 0 : i32
    %18 = arith.cmpi ne, %17, %c0_i32_15 : i32
    scf.if %18 {
      %c0_16 = arith.constant 0 : index
      %c0_17 = arith.constant 0 : index
      %19 = vector.load %arg10[%c0_16, %c0_17] : memref<128x128xf32, #tpu.memory_space<vmem>>, vector<128x128xf32>
      %20 = arith.addf %3, %19 : vector<128x128xf32>
      %c0_18 = arith.constant 0 : index
      %c0_19 = arith.constant 0 : index
      %21 = vector.load %arg6[%c0_18, %c0_19] : memref<1x128xf32, #tpu.memory_space<vmem>>, vector<1x128xf32>
      %22 = vector.broadcast %21 : vector<1x128xf32> to vector<128x128xf32>
      %23 = arith.addf %20, %22 : vector<128x128xf32>
      %cst_20 = arith.constant dense<0.000000e+00> : vector<128xf32>
      %24 = vector.multi_reduction <add>, %23, %cst_20 [1] : vector<128x128xf32> to vector<128xf32>
      %25 = vector.shape_cast %24 : vector<128xf32> to vector<128x1xf32>
      %cst_21 = arith.constant 3.125000e-02 : f32
      %26 = vector.broadcast %cst_21 : f32 to vector<128x1xf32>
      %27 = arith.mulf %25, %26 : vector<128x1xf32>
      %28 = vector.broadcast %27 : vector<128x1xf32> to vector<128x128xf32>
      %29 = arith.subf %23, %28 : vector<128x128xf32>
      %30 = tpu.iota {dimensions = array<i32: 1>} : vector<1x128xi32>
      %c32_i32 = arith.constant 32 : i32
      %31 = vector.broadcast %c32_i32 : i32 to vector<1x128xi32>
      %32 = arith.cmpi slt, %30, %31 : vector<1x128xi32>
      %cst_22 = arith.constant 0.000000e+00 : f32
      %33 = vector.shape_cast %32 : vector<1x128xi1> to vector<1x128xi1>
      %34 = vector.broadcast %33 : vector<1x128xi1> to vector<128x128xi1>
      %35 = vector.broadcast %cst_22 : f32 to vector<128x128xf32>
      %36 = arith.select %34, %29, %35 : vector<128x128xi1>, vector<128x128xf32>
      %37 = arith.mulf %36, %36 : vector<128x128xf32>
      %cst_23 = arith.constant dense<0.000000e+00> : vector<128xf32>
      %38 = vector.multi_reduction <add>, %37, %cst_23 [1] : vector<128x128xf32> to vector<128xf32>
      %39 = vector.shape_cast %38 : vector<128xf32> to vector<128x1xf32>
      %cst_24 = arith.constant 3.125000e-02 : f32
      %40 = vector.broadcast %cst_24 : f32 to vector<128x1xf32>
      %41 = arith.mulf %39, %40 : vector<128x1xf32>
      %cst_25 = arith.constant 9.99999974E-6 : f32
      %42 = vector.broadcast %cst_25 : f32 to vector<128x1xf32>
      %43 = arith.addf %41, %42 : vector<128x1xf32>
      %44 = math.rsqrt %43 : vector<128x1xf32>
      %45 = vector.broadcast %44 : vector<128x1xf32> to vector<128x128xf32>
      %46 = arith.mulf %36, %45 : vector<128x128xf32>
      %c0_26 = arith.constant 0 : index
      %c0_27 = arith.constant 0 : index
      %47 = vector.load %arg7[%c0_26, %c0_27] : memref<1x128xf32, #tpu.memory_space<vmem>>, vector<1x128xf32>
      %48 = vector.broadcast %47 : vector<1x128xf32> to vector<128x128xf32>
      %49 = arith.mulf %46, %48 : vector<128x128xf32>
      %c0_28 = arith.constant 0 : index
      %c0_29 = arith.constant 0 : index
      %50 = vector.load %arg8[%c0_28, %c0_29] : memref<1x128xf32, #tpu.memory_space<vmem>>, vector<1x128xf32>
      %51 = vector.broadcast %50 : vector<1x128xf32> to vector<128x128xf32>
      %52 = arith.addf %49, %51 : vector<128x128xf32>
      %c0_30 = arith.constant 0 : index
      %c0_31 = arith.constant 0 : index
      %53 = vector.load %arg9[%c0_30, %c0_31] : memref<128x128xf32, #tpu.memory_space<vmem>>, vector<128x128xf32>
      tpu.vector_store %arg9[%c0_30, %c0_31], %52 {strides = array<i32>} : memref<128x128xf32, #tpu.memory_space<vmem>>, vector<128x128xf32>,
    } else {
    }
    return
  }
  func.func @transform_0(%arg0: i32, %arg1: i32) -> (i32, i32) {
    %c0_i32 = arith.constant 0 : i32
    %c0_i32_0 = arith.constant 0 : i32
    return %arg0, %c0_i32 : i32, i32
  }
  func.func @transform_1(%arg0: i32, %arg1: i32) -> (i32, i32) {
    %c0_i32 = arith.constant 0 : i32
    %c0_i32_0 = arith.constant 0 : i32
    return %c0_i32, %arg1 : i32, i32
  }
  func.func @transform_2(%arg0: i32, %arg1: i32) -> (i32, i32) {
    %c0_i32 = arith.constant 0 : i32
    %c0_i32_0 = arith.constant 0 : i32
    return %c0_i32, %arg1 : i32, i32
  }
  func.func @transform_3(%arg0: i32, %arg1: i32) -> (i32, i32) {
    %c0_i32 = arith.constant 0 : i32
    %c0_i32_0 = arith.constant 0 : i32
    return %arg1, %c0_i32 : i32, i32
  }
  func.func @transform_4(%arg0: i32, %arg1: i32) -> (i32, i32) {
    %c0_i32 = arith.constant 0 : i32
    %c0_i32_0 = arith.constant 0 : i32
    %c0_i32_1 = arith.constant 0 : i32
    return %c0_i32, %c0_i32_0 : i32, i32
  }
  func.func @transform_5(%arg0: i32, %arg1: i32) -> (i32, i32) {
    %c0_i32 = arith.constant 0 : i32
    %c0_i32_0 = arith.constant 0 : i32
    %c0_i32_1 = arith.constant 0 : i32
    return %c0_i32, %c0_i32_0 : i32, i32
  }
  func.func @transform_6(%arg0: i32, %arg1: i32) -> (i32, i32) {
    %c0_i32 = arith.constant 0 : i32
    %c0_i32_0 = arith.constant 0 : i32
    %c0_i32_1 = arith.constant 0 : i32
    return %c0_i32, %c0_i32_0 : i32, i32
  }
  func.func @transform_7(%arg0: i32, %arg1: i32) -> (i32, i32) {
    %c0_i32 = arith.constant 0 : i32
    %c0_i32_0 = arith.constant 0 : i32
    return %arg0, %c0_i32 : i32, i32
  }
}

</mosaic_0001>

<llo_original>
// kernel: tpu_custom_call.1
$region0: #{tpu_custom_call.1}
  #allocation0 [shape = 'u32[]', space=smem, size = 0x4, offset = 0x4, fixed_abs, tag = 'smem constant byte address 0x4 - core index']
  #allocation1 [shape = 'u32[144,128]{1,0:T(1,128)}', space=vmem, size = 0x12000, scoped, tag = 'internal scratch']
  #allocation2 [shape = 'f32[128,128]{1,0:T(8,128)}', space=vmem, size = 0x10000, scoped, tag = 'scratch operand']
  %s0 = inlined_call_operand.hbm [shape: f32[128,128], index: 0, kind: input, shape index: {}]
  %s1 = inlined_call_operand.hbm [shape: f32[128,256], index: 1, kind: input, shape index: {}]
  %s2 = inlined_call_operand.vmem [shape: f32[1,256], index: 2, kind: input, shape index: {}]
  %s3 = inlined_call_operand.hbm [shape: f32[256,128], index: 3, kind: input, shape index: {}]
  %s4 = inlined_call_operand.vmem [shape: f32[1,128], index: 4, kind: input, shape index: {}]
  %s5 = inlined_call_operand.vmem [shape: f32[1,128], index: 5, kind: input, shape index: {}]
  %s6 = inlined_call_operand.vmem [shape: f32[1,128], index: 6, kind: input, shape index: {}]
  %s7 = inlined_call_operand.hbm [shape: f32[128,128], index: 7, kind: output, shape index: {}]
  %s8 = sld [smem:[#allocation0]]
  $region58: #{tpu_custom_call.1} parent=0
    _
  %s10 = ssub.s32 1, %s8
  %s11 = scalar_select 0, %s10, %s8
  $region1: #{tpu_custom_call.1} parent=0
    #allocation3 [shape = 'u8[65536]{0}', space=vmem, size = 0x10000, scoped, tag = 'input window, operand 0, single buffered']
    #allocation4 [shape = 's32[1]{0}', space=sflag, size = 0x4, scoped, tag = 'scoped memory for tpu_custom_call.1']
    #allocation5 [shape = 's32[1]{0}', space=sflag, size = 0x4, scoped, tag = 'scoped memory for tpu_custom_call.1']
    #allocation6 [shape = 'u8[131072]{0}', space=vmem, size = 0x20000, scoped, tag = 'input window, operand 1, single buffered']
    #allocation7 [shape = 's32[1]{0}', space=sflag, size = 0x4, scoped, tag = 'scoped memory for tpu_custom_call.1']
    #allocation8 [shape = 'u8[131072]{0}', space=vmem, size = 0x20000, scoped, tag = 'input window, operand 3, single buffered']
    #allocation9 [shape = 'u8[65536]{0}', space=vmem, size = 0x10000, scoped, tag = 'output window, operand 0, single buffered']
    %12 = vsyncpa [#allocation4], 0
    %13 = vsyncpa [#allocation7], 0
    %14 = vsyncpa [#allocation5], 0
    // Predicated region
    $region2: #{tpu_custom_call.1} parent=1 // pred_check
      _
    $region3: #{tpu_custom_call.1} parent=1 // pred_check_branch
      %16 = sbr.rel (0) target = $region5
    $region4: #{tpu_custom_call.1} parent=1 // pred_region
      %s18 = ssub.s32 2048, 2048
      %19 = vsyncadd [#allocation4], %s18
      %s20 = sshll.u32 [#allocation3], 4
      %s21 = int_to_ptr.vmem [resolvable:$true] %s20
      %26 = dma.hbm_to_vmem [thread:$0]  %s0, 2048, %s21, [#allocation4], 128, 128, 8
    $region5: #{tpu_custom_call.1} parent=1 // pred_fallthru
      _
    // Predicated region
    $region6: #{tpu_custom_call.1} parent=1 // pred_check
      _
    $region7: #{tpu_custom_call.1} parent=1 // pred_check_branch
      %28 = sbr.rel (0) target = $region9
    $region8: #{tpu_custom_call.1} parent=1 // pred_region
      %s30 = ssub.s32 4096, 4096
      %31 = vsyncadd [#allocation7], %s30
      %s32 = sshll.u32 [#allocation6], 4
      %s33 = int_to_ptr.vmem [resolvable:$true] %s32
      %38 = dma.hbm_to_vmem [thread:$0]  %s1, 4096, %s33, [#allocation7], 256, 256, 16
    $region9: #{tpu_custom_call.1} parent=1 // pred_fallthru
      _
    // Predicated region
    $region10: #{tpu_custom_call.1} parent=1 // pred_check
      _
    $region11: #{tpu_custom_call.1} parent=1 // pred_check_branch
      %40 = sbr.rel (0) target = $region13
    $region12: #{tpu_custom_call.1} parent=1 // pred_region
      _
    $region13: #{tpu_custom_call.1} parent=1 // pred_fallthru
      _
    // Predicated region
    $region14: #{tpu_custom_call.1} parent=1 // pred_check
      _
    $region15: #{tpu_custom_call.1} parent=1 // pred_check_branch
      %42 = sbr.rel (0) target = $region17
    $region16: #{tpu_custom_call.1} parent=1 // pred_region
      %s44 = ssub.s32 4096, 4096
      %45 = vsyncadd [#allocation7], %s44
      %s46 = sshll.u32 [#allocation8], 4
      %s47 = int_to_ptr.vmem [resolvable:$true] %s46
      %52 = dma.hbm_to_vmem [thread:$0]  %s3, 4096, %s47, [#allocation7], 128, 128, 8
    $region17: #{tpu_custom_call.1} parent=1 // pred_fallthru
      _
    // Predicated region
    $region18: #{tpu_custom_call.1} parent=1 // pred_check
      _
    $region19: #{tpu_custom_call.1} parent=1 // pred_check_branch
      %54 = sbr.rel (0) target = $region21
    $region20: #{tpu_custom_call.1} parent=1 // pred_region
      _
    $region21: #{tpu_custom_call.1} parent=1 // pred_fallthru
      _
    // Predicated region
    $region22: #{tpu_custom_call.1} parent=1 // pred_check
      _
    $region23: #{tpu_custom_call.1} parent=1 // pred_check_branch
      %56 = sbr.rel (0) target = $region25
    $region24: #{tpu_custom_call.1} parent=1 // pred_region
      _
    $region25: #{tpu_custom_call.1} parent=1 // pred_fallthru
      _
    // Predicated region
    $region26: #{tpu_custom_call.1} parent=1 // pred_check
      _
    $region27: #{tpu_custom_call.1} parent=1 // pred_check_branch
      %58 = sbr.rel (0) target = $region29
    $region28: #{tpu_custom_call.1} parent=1 // pred_region
      _
    $region29: #{tpu_custom_call.1} parent=1 // pred_fallthru
      _
    // Predicated region
    $region30: #{tpu_custom_call.1} parent=1 // pred_check
      _
    $region31: #{tpu_custom_call.1} parent=1 // pred_check_branch
      %60 = sbr.rel (0) target = $region33
    $region32: #{tpu_custom_call.1} parent=1 // pred_region
      %61 = dma.done [#allocation4], 2048
    $region33: #{tpu_custom_call.1} parent=1 // pred_fallthru
      _
    // Predicated region
    $region34: #{tpu_custom_call.1} parent=1 // pred_check
      _
    $region35: #{tpu_custom_call.1} parent=1 // pred_check_branch
      %63 = sbr.rel (0) target = $region37
    $region36: #{tpu_custom_call.1} parent=1 // pred_region
      %64 = dma.done [#allocation7], 4096
    $region37: #{tpu_custom_call.1} parent=1 // pred_fallthru
      _
    // Predicated region
    $region38: #{tpu_custom_call.1} parent=1 // pred_check
      _
    $region39: #{tpu_custom_call.1} parent=1 // pred_check_branch
      %66 = sbr.rel (0) target = $region41
    $region40: #{tpu_custom_call.1} parent=1 // pred_region
      %67 = dma.done [#allocation7], 4096
    $region41: #{tpu_custom_call.1} parent=1 // pred_fallthru
      _
    %p68 = scmp.eq.s32.totalorder 0, 0
    // Predicated region
    $region42: #{tpu_custom_call.1} parent=1 // pred_check
      %p69 = pneg %p68
    $region43: #{tpu_custom_call.1} parent=1 // pred_check_branch
      %71 = sbr.rel (%p69) target = $region45
    $region44: #{tpu_custom_call.1} parent=1 // pred_region
      %72 = vst [vmem:[#allocation2] sm:$0xff] 0.0
      %73 = vst [vmem:[#allocation2 + $0x8] sm:$0xff] 0.0
      %74 = vst [vmem:[#allocation2 + $0x10] sm:$0xff] 0.0
      %75 = vst [vmem:[#allocation2 + $0x18] sm:$0xff] 0.0
      %76 = vst [vmem:[#allocation2 + $0x20] sm:$0xff] 0.0
      %77 = vst [vmem:[#allocation2 + $0x28] sm:$0xff] 0.0
      %78 = vst [vmem:[#allocation2 + $0x30] sm:$0xff] 0.0
      %79 = vst [vmem:[#allocation2 + $0x38] sm:$0xff] 0.0
      %80 = vst [vmem:[#allocation2 + $0x40] sm:$0xff] 0.0
      %81 = vst [vmem:[#allocation2 + $0x48] sm:$0xff] 0.0
      %82 = vst [vmem:[#allocation2 + $0x50] sm:$0xff] 0.0
      %83 = vst [vmem:[#allocation2 + $0x58] sm:$0xff] 0.0
      %84 = vst [vmem:[#allocation2 + $0x60] sm:$0xff] 0.0
      %85 = vst [vmem:[#allocation2 + $0x68] sm:$0xff] 0.0
      %86 = vst [vmem:[#allocation2 + $0x70] sm:$0xff] 0.0
      %87 = vst [vmem:[#allocation2 + $0x78] sm:$0xff] 0.0
    $region45: #{tpu_custom_call.1} parent=1 // pred_fallthru
      _
    %v88 = vld [vmem:[#allocation3] sm:$0xff]
    %v89 = vld [vmem:[#allocation3 + $0x8] sm:$0xff]
    %v90 = vld [vmem:[#allocation3 + $0x10] sm:$0xff]
    %v91 = vld [vmem:[#allocation3 + $0x18] sm:$0xff]
    %v92 = vld [vmem:[#allocation3 + $0x20] sm:$0xff]
    %v93 = vld [vmem:[#allocation3 + $0x28] sm:$0xff]
    %v94 = vld [vmem:[#allocation3 + $0x30] sm:$0xff]
    %v95 = vld [vmem:[#allocation3 + $0x38] sm:$0xff]
    %v96 = vld [vmem:[#allocation3 + $0x40] sm:$0xff]
    %v97 = vld [vmem:[#allocation3 + $0x48] sm:$0xff]
    %v98 = vld [vmem:[#allocation3 + $0x50] sm:$0xff]
    %v99 = vld [vmem:[#allocation3 + $0x58] sm:$0xff]
    %v100 = vld [vmem:[#allocation3 + $0x60] sm:$0xff]
    %v101 = vld [vmem:[#allocation3 + $0x68] sm:$0xff]
    %v102 = vld [vmem:[#allocation3 + $0x70] sm:$0xff]
    %v103 = vld [vmem:[#allocation3 + $0x78] sm:$0xff]
    %v104 = vld [vmem:[#allocation6] sm:$0xff]
    %v105 = vld [vmem:[#allocation6 + $0x8] sm:$0xff]
    %v106 = vld [vmem:[#allocation6 + $0x10] sm:$0xff]
    %v107 = vld [vmem:[#allocation6 + $0x18] sm:$0xff]
    %v108 = vld [vmem:[#allocation6 + $0x20] sm:$0xff]
    %v109 = vld [vmem:[#allocation6 + $0x28] sm:$0xff]
    %v110 = vld [vmem:[#allocation6 + $0x30] sm:$0xff]
    %v111 = vld [vmem:[#allocation6 + $0x38] sm:$0xff]
    %v112 = vld [vmem:[#allocation6 + $0x40] sm:$0xff]
    %v113 = vld [vmem:[#allocation6 + $0x48] sm:$0xff]
    %v114 = vld [vmem:[#allocation6 + $0x50] sm:$0xff]
    %v115 = vld [vmem:[#allocation6 + $0x58] sm:$0xff]
    %v116 = vld [vmem:[#allocation6 + $0x60] sm:$0xff]
    %v117 = vld [vmem:[#allocation6 + $0x68] sm:$0xff]
    %v118 = vld [vmem:[#allocation6 + $0x70] sm:$0xff]
    %v119 = vld [vmem:[#allocation6 + $0x78] sm:$0xff]
    %v120 = vld [vmem:[#allocation6 + $0x80] sm:$0xff]
    %v121 = vld [vmem:[#allocation6 + $0x88] sm:$0xff]
    %v122 = vld [vmem:[#allocation6 + $0x90] sm:$0xff]
    %v123 = vld [vmem:[#allocation6 + $0x98] sm:$0xff]
    %v124 = vld [vmem:[#allocation6 + $0xa0] sm:$0xff]
    %v125 = vld [vmem:[#allocation6 + $0xa8] sm:$0xff]
    %v126 = vld [vmem:[#allocation6 + $0xb0] sm:$0xff]
    %v127 = vld [vmem:[#allocation6 + $0xb8] sm:$0xff]
    %v128 = vld [vmem:[#allocation6 + $0xc0] sm:$0xff]
    %v129 = vld [vmem:[#allocation6 + $0xc8] sm:$0xff]
    %v130 = vld [vmem:[#allocation6 + $0xd0] sm:$0xff]
    %v131 = vld [vmem:[#allocation6 + $0xd8] sm:$0xff]
    %v132 = vld [vmem:[#allocation6 + $0xe0] sm:$0xff]
    %v133 = vld [vmem:[#allocation6 + $0xe8] sm:$0xff]
    %v134 = vld [vmem:[#allocation6 + $0xf0] sm:$0xff]
    %v135 = vld [vmem:[#allocation6 + $0xf8] sm:$0xff]
    %v136 = vld [vmem:[%s2] sm:$0x3]
    %v138 = vlaneseq
    %v139 = vshrl.u32 %v138, 7
    %v140 = vsub.s32 0, %v139
    %v141 = vrot.slane %v136, %v140
    %v142 = vlaneseq
    %v143 = vshrl.u32 %v142, 7
    %v144 = vsub.s32 1, %v143
    %v145 = vrot.slane %v136, %v144
    %148 = vmatprep.subr.mxu0 %v105
    %149 = vmatpush1.msra.mxu0 %v104
    %150 = vmatprep.subr.mxu0 %v107
    %151 = vmatpush1.msra.mxu0 %v106
    %152 = vmatprep.subr.mxu0 %v109
    %153 = vmatpush1.msra.mxu0 %v108
    %154 = vmatprep.subr.mxu0 %v111
    %155 = vmatpush1.msra.mxu0 %v110
    %156 = vmatprep.subr.mxu0 %v113
    %157 = vmatpush1.msra.mxu0 %v112
    %158 = vmatprep.subr.mxu0 %v115
    %159 = vmatpush1.msra.mxu0 %v114
    %160 = vmatprep.subr.mxu0 %v117
    %161 = vmatpush1.msra.mxu0 %v116
    %162 = vmatprep.subr.mxu0 %v119
    %163 = vmatpush1.msra.mxu0 %v118
    %164 = vmatprep.subr.mxu0 %v121
    %165 = vmatpush1.msra.mxu0 %v120
    %166 = vmatprep.subr.mxu0 %v123
    %167 = vmatpush1.msra.mxu0 %v122
    %168 = vmatprep.subr.mxu0 %v125
    %169 = vmatpush1.msra.mxu0 %v124
    %170 = vmatprep.subr.mxu0 %v127
    %171 = vmatpush1.msra.mxu0 %v126
    %172 = vmatprep.subr.mxu0 %v129
    %173 = vmatpush1.msra.mxu0 %v128
    %174 = vmatprep.subr.mxu0 %v131
    %175 = vmatpush1.msra.mxu0 %v130
    %176 = vmatprep.subr.mxu0 %v133
    %177 = vmatpush1.msra.mxu0 %v132
    %178 = vmatprep.subr.mxu0 %v135
    %179 = vmatpush1.msra.mxu0 %v134
    %180 = vmatprep.subr.mxu0 0.0
    %181 = vmatpush1.msra.mxu0 0.0
    %182 = vmatprep.subr.mxu0 0.0
    %183 = vmatpush1.msra.mxu0 0.0
    %184 = vmatprep.subr.mxu0 0.0
    %185 = vmatpush1.msra.mxu0 0.0
    %186 = vmatprep.subr.mxu0 0.0
    %187 = vmatpush1.msra.mxu0 0.0
    %188 = vmatprep.subr.mxu0 0.0
    %189 = vmatpush1.msra.mxu0 0.0
    %190 = vmatprep.subr.mxu0 0.0
    %191 = vmatpush1.msra.mxu0 0.0
    %192 = vmatprep.subr.mxu0 0.0
    %193 = vmatpush1.msra.mxu0 0.0
    %194 = vmatprep.subr.mxu0 0.0
    %195 = vmatpush1.msra.mxu0 0.0
    %196 = vmatprep.subr.mxu0 0.0
    %197 = vmatpush1.msra.mxu0 0.0
    %198 = vmatprep.subr.mxu0 0.0
    %199 = vmatpush1.msra.mxu0 0.0
    %200 = vmatprep.subr.mxu0 0.0
    %201 = vmatpush1.msra.mxu0 0.0
    %202 = vmatprep.subr.mxu0 0.0
    %203 = vmatpush1.msra.mxu0 0.0
    %204 = vmatprep.subr.mxu0 0.0
    %205 = vmatpush1.msra.mxu0 0.0
    %206 = vmatprep.subr.mxu0 0.0
    %207 = vmatpush1.msra.mxu0 0.0
    %208 = vmatprep.subr.mxu0 0.0
    %209 = vmatpush1.msra.mxu0 0.0
    %210 = vmatprep.subr.mxu0 0.0
    %211 = vmatpush1.msra.mxu0 0.0
    %212 = vmatprep.mubr.f32.mxu0 0.0
    %213 = vmatmul.mubr.f32.gmra.mrb[0].mxu0 %v88
    %v214 = vpop.f32.mrb[0].mxu0
    %v215 = vadd.f32 %v141, %v214
    %v216 = vpop.f32.mrb[0].mxu0
    %v217 = vadd.f32 %v145, %v216
    %218 = vmatprep.mubr.f32.mxu0 0.0
    %219 = vmatmul.mubr.f32.gmra.mrb[0].mxu0 %v89
    %v220 = vpop.f32.mrb[0].mxu0
    %v221 = vadd.f32 %v141, %v220
    %v222 = vpop.f32.mrb[0].mxu0
    %v223 = vadd.f32 %v145, %v222
    %224 = vmatprep.mubr.f32.mxu0 0.0
    %225 = vmatmul.mubr.f32.gmra.mrb[0].mxu0 %v90
    %v226 = vpop.f32.mrb[0].mxu0
    %v227 = vadd.f32 %v141, %v226
    %v228 = vpop.f32.mrb[0].mxu0
    %v229 = vadd.f32 %v145, %v228
    %230 = vmatprep.mubr.f32.mxu0 0.0
    %231 = vmatmul.mubr.f32.gmra.mrb[0].mxu0 %v91
    %v232 = vpop.f32.mrb[0].mxu0
    %v233 = vadd.f32 %v141, %v232
    %v234 = vpop.f32.mrb[0].mxu0
    %v235 = vadd.f32 %v145, %v234
    %236 = vmatprep.mubr.f32.mxu0 0.0
    %237 = vmatmul.mubr.f32.gmra.mrb[0].mxu0 %v92
    %v238 = vpop.f32.mrb[0].mxu0
    %v239 = vadd.f32 %v141, %v238
    %v240 = vpop.f32.mrb[0].mxu0
    %v241 = vadd.f32 %v145, %v240
    %242 = vmatprep.mubr.f32.mxu0 0.0
    %243 = vmatmul.mubr.f32.gmra.mrb[0].mxu0 %v93
    %v244 = vpop.f32.mrb[0].mxu0
    %v245 = vadd.f32 %v141, %v244
    %v246 = vpop.f32.mrb[0].mxu0
    %v247 = vadd.f32 %v145, %v246
    %248 = vmatprep.mubr.f32.mxu0 0.0
    %249 = vmatmul.mubr.f32.gmra.mrb[0].mxu0 %v94
    %v250 = vpop.f32.mrb[0].mxu0
    %v251 = vadd.f32 %v141, %v250
    %v252 = vpop.f32.mrb[0].mxu0
    %v253 = vadd.f32 %v145, %v252
    %254 = vmatprep.mubr.f32.mxu0 0.0
    %255 = vmatmul.mubr.f32.gmra.mrb[0].mxu0 %v95
    %v256 = vpop.f32.mrb[0].mxu0
    %v257 = vadd.f32 %v141, %v256
    %v258 = vpop.f32.mrb[0].mxu0
    %v259 = vadd.f32 %v145, %v258
    %260 = vmatprep.mubr.f32.mxu0 0.0
    %261 = vmatmul.mubr.f32.gmra.mrb[0].mxu0 %v96
    %v262 = vpop.f32.mrb[0].mxu0
    %v263 = vadd.f32 %v141, %v262
    %v264 = vpop.f32.mrb[0].mxu0
    %v265 = vadd.f32 %v145, %v264
    %266 = vmatprep.mubr.f32.mxu0 0.0
    %267 = vmatmul.mubr.f32.gmra.mrb[0].mxu0 %v97
    %v268 = vpop.f32.mrb[0].mxu0
    %v269 = vadd.f32 %v141, %v268
    %v270 = vpop.f32.mrb[0].mxu0
    %v271 = vadd.f32 %v145, %v270
    %272 = vmatprep.mubr.f32.mxu0 0.0
    %273 = vmatmul.mubr.f32.gmra.mrb[0].mxu0 %v98
    %v274 = vpop.f32.mrb[0].mxu0
    %v275 = vadd.f32 %v141, %v274
    %v276 = vpop.f32.mrb[0].mxu0
    %v277 = vadd.f32 %v145, %v276
    %278 = vmatprep.mubr.f32.mxu0 0.0
    %279 = vmatmul.mubr.f32.gmra.mrb[0].mxu0 %v99
    %v280 = vpop.f32.mrb[0].mxu0
    %v281 = vadd.f32 %v141, %v280
    %v282 = vpop.f32.mrb[0].mxu0
    %v283 = vadd.f32 %v145, %v282
    %284 = vmatprep.mubr.f32.mxu0 0.0
    %285 = vmatmul.mubr.f32.gmra.mrb[0].mxu0 %v100
    %v286 = vpop.f32.mrb[0].mxu0
    %v287 = vadd.f32 %v141, %v286
    %v288 = vpop.f32.mrb[0].mxu0
    %v289 = vadd.f32 %v145, %v288
    %290 = vmatprep.mubr.f32.mxu0 0.0
    %291 = vmatmul.mubr.f32.gmra.mrb[0].mxu0 %v101
    %v292 = vpop.f32.mrb[0].mxu0
    %v293 = vadd.f32 %v141, %v292
    %v294 = vpop.f32.mrb[0].mxu0
    %v295 = vadd.f32 %v145, %v294
    %296 = vmatprep.mubr.f32.mxu0 0.0
    %297 = vmatmul.mubr.f32.gmra.mrb[0].mxu0 %v102
    %v298 = vpop.f32.mrb[0].mxu0
    %v299 = vadd.f32 %v141, %v298
    %v300 = vpop.f32.mrb[0].mxu0
    %v301 = vadd.f32 %v145, %v300
    %302 = vmatprep.mubr.f32.mxu0 0.0
    %303 = vmatmul.mubr.f32.gmra.mrb[0].mxu0 %v103
    %v304 = vpop.f32.mrb[0].mxu0
    %v305 = vadd.f32 %v141, %v304
    %v306 = vpop.f32.mrb[0].mxu0
    %v307 = vadd.f32 %v145, %v306
    %308 = vdwg.mxu0
    %v309 = vmax.f32 %v215, 0.0
    %v310 = vmax.f32 %v217, 0.0
    %v311 = vmax.f32 %v221, 0.0
    %v312 = vmax.f32 %v223, 0.0
    %v313 = vmax.f32 %v227, 0.0
    %v314 = vmax.f32 %v229, 0.0
    %v315 = vmax.f32 %v233, 0.0
    %v316 = vmax.f32 %v235, 0.0
    %v317 = vmax.f32 %v239, 0.0
    %v318 = vmax.f32 %v241, 0.0
    %v319 = vmax.f32 %v245, 0.0
    %v320 = vmax.f32 %v247, 0.0
    %v321 = vmax.f32 %v251, 0.0
    %v322 = vmax.f32 %v253, 0.0
    %v323 = vmax.f32 %v257, 0.0
    %v324 = vmax.f32 %v259, 0.0
    %v325 = vmax.f32 %v263, 0.0
    %v326 = vmax.f32 %v265, 0.0
    %v327 = vmax.f32 %v269, 0.0
    %v328 = vmax.f32 %v271, 0.0
    %v329 = vmax.f32 %v275, 0.0
    %v330 = vmax.f32 %v277, 0.0
    %v331 = vmax.f32 %v281, 0.0
    %v332 = vmax.f32 %v283, 0.0
    %v333 = vmax.f32 %v287, 0.0
    %v334 = vmax.f32 %v289, 0.0
    %v335 = vmax.f32 %v293, 0.0
    %v336 = vmax.f32 %v295, 0.0
    %v337 = vmax.f32 %v299, 0.0
    %v338 = vmax.f32 %v301, 0.0
    %v339 = vmax.f32 %v305, 0.0
    %v340 = vmax.f32 %v307, 0.0
    %v341 = vld [vmem:[#allocation2] sm:$0xff]
    %v342 = vld [vmem:[#allocation2 + $0x8] sm:$0xff]
    %v343 = vld [vmem:[#allocation2 + $0x10] sm:$0xff]
    %v344 = vld [vmem:[#allocation2 + $0x18] sm:$0xff]
    %v345 = vld [vmem:[#allocation2 + $0x20] sm:$0xff]
    %v346 = vld [vmem:[#allocation2 + $0x28] sm:$0xff]
    %v347 = vld [vmem:[#allocation2 + $0x30] sm:$0xff]
    %v348 = vld [vmem:[#allocation2 + $0x38] sm:$0xff]
    %v349 = vld [vmem:[#allocation2 + $0x40] sm:$0xff]
    %v350 = vld [vmem:[#allocation2 + $0x48] sm:$0xff]
    %v351 = vld [vmem:[#allocation2 + $0x50] sm:$0xff]
    %v352 = vld [vmem:[#allocation2 + $0x58] sm:$0xff]
    %v353 = vld [vmem:[#allocation2 + $0x60] sm:$0xff]
    %v354 = vld [vmem:[#allocation2 + $0x68] sm:$0xff]
    %v355 = vld [vmem:[#allocation2 + $0x70] sm:$0xff]
    %v356 = vld [vmem:[#allocation2 + $0x78] sm:$0xff]
    %v357 = vld [vmem:[#allocation8] sm:$0xff]
    %v358 = vld [vmem:[#allocation8 + $0x8] sm:$0xff]
    %v359 = vld [vmem:[#allocation8 + $0x10] sm:$0xff]
    %v360 = vld [vmem:[#allocation8 + $0x18] sm:$0xff]
    %v361 = vld [vmem:[#allocation8 + $0x20] sm:$0xff]
    %v362 = vld [vmem:[#allocation8 + $0x28] sm:$0xff]
    %v363 = vld [vmem:[#allocation8 + $0x30] sm:$0xff]
    %v364 = vld [vmem:[#allocation8 + $0x38] sm:$0xff]
    %v365 = vld [vmem:[#allocation8 + $0x40] sm:$0xff]
    %v366 = vld [vmem:[#allocation8 + $0x48] sm:$0xff]
    %v367 = vld [vmem:[#allocation8 + $0x50] sm:$0xff]
    %v368 = vld [vmem:[#allocation8 + $0x58] sm:$0xff]
    %v369 = vld [vmem:[#allocation8 + $0x60] sm:$0xff]
    %v370 = vld [vmem:[#allocation8 + $0x68] sm:$0xff]
    %v371 = vld [vmem:[#allocation8 + $0x70] sm:$0xff]
    %v372 = vld [vmem:[#allocation8 + $0x78] sm:$0xff]
    %v373 = vld [vmem:[#allocation8 + $0x80] sm:$0xff]
    %v374 = vld [vmem:[#allocation8 + $0x88] sm:$0xff]
    %v375 = vld [vmem:[#allocation8 + $0x90] sm:$0xff]
    %v376 = vld [vmem:[#allocation8 + $0x98] sm:$0xff]
    %v377 = vld [vmem:[#allocation8 + $0xa0] sm:$0xff]
    %v378 = vld [vmem:[#allocation8 + $0xa8] sm:$0xff]
    %v379 = vld [vmem:[#allocation8 + $0xb0] sm:$0xff]
    %v380 = vld [vmem:[#allocation8 + $0xb8] sm:$0xff]
    %v381 = vld [vmem:[#allocation8 + $0xc0] sm:$0xff]
    %v382 = vld [vmem:[#allocation8 + $0xc8] sm:$0xff]
    %v383 = vld [vmem:[#allocation8 + $0xd0] sm:$0xff]
    %v384 = vld [vmem:[#allocation8 + $0xd8] sm:$0xff]
    %v385 = vld [vmem:[#allocation8 + $0xe0] sm:$0xff]
    %v386 = vld [vmem:[#allocation8 + $0xe8] sm:$0xff]
    %v387 = vld [vmem:[#allocation8 + $0xf0] sm:$0xff]
    %v388 = vld [vmem:[#allocation8 + $0xf8] sm:$0xff]
    %389 = vmatprep.subr.mxu0 0.0
    %390 = vmatpush1.msra.mxu0 %v357
    %391 = vmatprep.subr.mxu0 0.0
    %392 = vmatpush1.msra.mxu0 %v358
    %393 = vmatprep.subr.mxu0 0.0
    %394 = vmatpush1.msra.mxu0 %v359
    %395 = vmatprep.subr.mxu0 0.0
    %396 = vmatpush1.msra.mxu0 %v360
    %397 = vmatprep.subr.mxu0 0.0
    %398 = vmatpush1.msra.mxu0 %v361
    %399 = vmatprep.subr.mxu0 0.0
    %400 = vmatpush1.msra.mxu0 %v362
    %401 = vmatprep.subr.mxu0 0.0
    %402 = vmatpush1.msra.mxu0 %v363
    %403 = vmatprep.subr.mxu0 0.0
    %404 = vmatpush1.msra.mxu0 %v364
    %405 = vmatprep.subr.mxu0 0.0
    %406 = vmatpush1.msra.mxu0 %v365
    %407 = vmatprep.subr.mxu0 0.0
    %408 = vmatpush1.msra.mxu0 %v366
    %409 = vmatprep.subr.mxu0 0.0
    %410 = vmatpush1.msra.mxu0 %v367
    %411 = vmatprep.subr.mxu0 0.0
    %412 = vmatpush1.msra.mxu0 %v368
    %413 = vmatprep.subr.mxu0 0.0
    %414 = vmatpush1.msra.mxu0 %v369
    %415 = vmatprep.subr.mxu0 0.0
    %416 = vmatpush1.msra.mxu0 %v370
    %417 = vmatprep.subr.mxu0 0.0
    %418 = vmatpush1.msra.mxu0 %v371
    %419 = vmatprep.subr.mxu0 0.0
    %420 = vmatpush1.msra.mxu0 %v372
    %421 = vmatprep.subr.mxu0 0.0
    %422 = vmatpush1.msra.mxu0 %v373
    %423 = vmatprep.subr.mxu0 0.0
    %424 = vmatpush1.msra.mxu0 %v374
    %425 = vmatprep.subr.mxu0 0.0
    %426 = vmatpush1.msra.mxu0 %v375
    %427 = vmatprep.subr.mxu0 0.0
    %428 = vmatpush1.msra.mxu0 %v376
    %429 = vmatprep.subr.mxu0 0.0
    %430 = vmatpush1.msra.mxu0 %v377
    %431 = vmatprep.subr.mxu0 0.0
    %432 = vmatpush1.msra.mxu0 %v378
    %433 = vmatprep.subr.mxu0 0.0
    %434 = vmatpush1.msra.mxu0 %v379
    %435 = vmatprep.subr.mxu0 0.0
    %436 = vmatpush1.msra.mxu0 %v380
    %437 = vmatprep.subr.mxu0 0.0
    %438 = vmatpush1.msra.mxu0 %v381
    %439 = vmatprep.subr.mxu0 0.0
    %440 = vmatpush1.msra.mxu0 %v382
    %441 = vmatprep.subr.mxu0 0.0
    %442 = vmatpush1.msra.mxu0 %v383
    %443 = vmatprep.subr.mxu0 0.0
    %444 = vmatpush1.msra.mxu0 %v384
    %445 = vmatprep.subr.mxu0 0.0
    %446 = vmatpush1.msra.mxu0 %v385
    %447 = vmatprep.subr.mxu0 0.0
    %448 = vmatpush1.msra.mxu0 %v386
    %449 = vmatprep.subr.mxu0 0.0
    %450 = vmatpush1.msra.mxu0 %v387
    %451 = vmatprep.subr.mxu0 0.0
    %452 = vmatpush1.msra.mxu0 %v388
    %453 = vmatprep.mubr.f32.mxu0 %v310
    %454 = vmatmul.mubr.f32.gmra.mrb[0].mxu0 %v309
    %v455 = vpop.f32.mrb[0].mxu0
    %v456 = vadd.f32 0.0, %v455
    %v457 = vpop.f32.mrb[0].mxu0
    %458 = vmatprep.mubr.f32.mxu0 %v312
    %459 = vmatmul.mubr.f32.gmra.mrb[0].mxu0 %v311
    %v460 = vpop.f32.mrb[0].mxu0
    %v461 = vadd.f32 0.0, %v460
    %v462 = vpop.f32.mrb[0].mxu0
    %463 = vmatprep.mubr.f32.mxu0 %v314
    %464 = vmatmul.mubr.f32.gmra.mrb[0].mxu0 %v313
    %v465 = vpop.f32.mrb[0].mxu0
    %v466 = vadd.f32 0.0, %v465
    %v467 = vpop.f32.mrb[0].mxu0
    %468 = vmatprep.mubr.f32.mxu0 %v316
    %469 = vmatmul.mubr.f32.gmra.mrb[0].mxu0 %v315
    %v470 = vpop.f32.mrb[0].mxu0
    %v471 = vadd.f32 0.0, %v470
    %v472 = vpop.f32.mrb[0].mxu0
    %473 = vmatprep.mubr.f32.mxu0 %v318
    %474 = vmatmul.mubr.f32.gmra.mrb[0].mxu0 %v317
    %v475 = vpop.f32.mrb[0].mxu0
    %v476 = vadd.f32 0.0, %v475
    %v477 = vpop.f32.mrb[0].mxu0
    %478 = vmatprep.mubr.f32.mxu0 %v320
    %479 = vmatmul.mubr.f32.gmra.mrb[0].mxu0 %v319
    %v480 = vpop.f32.mrb[0].mxu0
    %v481 = vadd.f32 0.0, %v480
    %v482 = vpop.f32.mrb[0].mxu0
    %483 = vmatprep.mubr.f32.mxu0 %v322
    %484 = vmatmul.mubr.f32.gmra.mrb[0].mxu0 %v321
    %v485 = vpop.f32.mrb[0].mxu0
    %v486 = vadd.f32 0.0, %v485
    %v487 = vpop.f32.mrb[0].mxu0
    %488 = vmatprep.mubr.f32.mxu0 %v324
    %489 = vmatmul.mubr.f32.gmra.mrb[0].mxu0 %v323
    %v490 = vpop.f32.mrb[0].mxu0
    %v491 = vadd.f32 0.0, %v490
    %v492 = vpop.f32.mrb[0].mxu0
    %493 = vmatprep.mubr.f32.mxu0 %v326
    %494 = vmatmul.mubr.f32.gmra.mrb[0].mxu0 %v325
    %v495 = vpop.f32.mrb[0].mxu0
    %v496 = vadd.f32 0.0, %v495
    %v497 = vpop.f32.mrb[0].mxu0
    %498 = vmatprep.mubr.f32.mxu0 %v328
    %499 = vmatmul.mubr.f32.gmra.mrb[0].mxu0 %v327
    %v500 = vpop.f32.mrb[0].mxu0
    %v501 = vadd.f32 0.0, %v500
    %v502 = vpop.f32.mrb[0].mxu0
    %503 = vmatprep.mubr.f32.mxu0 %v330
    %504 = vmatmul.mubr.f32.gmra.mrb[0].mxu0 %v329
    %v505 = vpop.f32.mrb[0].mxu0
    %v506 = vadd.f32 0.0, %v505
    %v507 = vpop.f32.mrb[0].mxu0
    %508 = vmatprep.mubr.f32.mxu0 %v332
    %509 = vmatmul.mubr.f32.gmra.mrb[0].mxu0 %v331
    %v510 = vpop.f32.mrb[0].mxu0
    %v511 = vadd.f32 0.0, %v510
    %v512 = vpop.f32.mrb[0].mxu0
    %513 = vmatprep.mubr.f32.mxu0 %v334
    %514 = vmatmul.mubr.f32.gmra.mrb[0].mxu0 %v333
    %v515 = vpop.f32.mrb[0].mxu0
    %v516 = vadd.f32 0.0, %v515
    %v517 = vpop.f32.mrb[0].mxu0
    %518 = vmatprep.mubr.f32.mxu0 %v336
    %519 = vmatmul.mubr.f32.gmra.mrb[0].mxu0 %v335
    %v520 = vpop.f32.mrb[0].mxu0
    %v521 = vadd.f32 0.0, %v520
    %v522 = vpop.f32.mrb[0].mxu0
    %523 = vmatprep.mubr.f32.mxu0 %v338
    %524 = vmatmul.mubr.f32.gmra.mrb[0].mxu0 %v337
    %v525 = vpop.f32.mrb[0].mxu0
    %v526 = vadd.f32 0.0, %v525
    %v527 = vpop.f32.mrb[0].mxu0
    %528 = vmatprep.mubr.f32.mxu0 %v340
    %529 = vmatmul.mubr.f32.gmra.mrb[0].mxu0 %v339
    %v530 = vpop.f32.mrb[0].mxu0
    %v531 = vadd.f32 0.0, %v530
    %v532 = vpop.f32.mrb[0].mxu0
    %533 = vdwg.mxu0
    %v534 = vadd.f32 %v341, %v456
    %v535 = vadd.f32 %v342, %v461
    %v536 = vadd.f32 %v343, %v466
    %v537 = vadd.f32 %v344, %v471
    %v538 = vadd.f32 %v345, %v476
    %v539 = vadd.f32 %v346, %v481
    %v540 = vadd.f32 %v347, %v486
    %v541 = vadd.f32 %v348, %v491
    %v542 = vadd.f32 %v349, %v496
    %v543 = vadd.f32 %v350, %v501
    %v544 = vadd.f32 %v351, %v506
    %v545 = vadd.f32 %v352, %v511
    %v546 = vadd.f32 %v353, %v516
    %v547 = vadd.f32 %v354, %v521
    %v548 = vadd.f32 %v355, %v526
    %v549 = vadd.f32 %v356, %v531
    %550 = vst [vmem:[#allocation2] sm:$0xff] %v534
    %551 = vst [vmem:[#allocation2 + $0x8] sm:$0xff] %v535
    %552 = vst [vmem:[#allocation2 + $0x10] sm:$0xff] %v536
    %553 = vst [vmem:[#allocation2 + $0x18] sm:$0xff] %v537
    %554 = vst [vmem:[#allocation2 + $0x20] sm:$0xff] %v538
    %555 = vst [vmem:[#allocation2 + $0x28] sm:$0xff] %v539
    %556 = vst [vmem:[#allocation2 + $0x30] sm:$0xff] %v540
    %557 = vst [vmem:[#allocation2 + $0x38] sm:$0xff] %v541
    %558 = vst [vmem:[#allocation2 + $0x40] sm:$0xff] %v542
    %559 = vst [vmem:[#allocation2 + $0x48] sm:$0xff] %v543
    %560 = vst [vmem:[#allocation2 + $0x50] sm:$0xff] %v544
    %561 = vst [vmem:[#allocation2 + $0x58] sm:$0xff] %v545
    %562 = vst [vmem:[#allocation2 + $0x60] sm:$0xff] %v546
    %563 = vst [vmem:[#allocation2 + $0x68] sm:$0xff] %v547
    %564 = vst [vmem:[#allocation2 + $0x70] sm:$0xff] %v548
    %565 = vst [vmem:[#allocation2 + $0x78] sm:$0xff] %v549
    // Predicated region
    $region46: #{tpu_custom_call.1} parent=1 // pred_check
      %p566 = pneg %p68
    $region47: #{tpu_custom_call.1} parent=1 // pred_check_branch
      %568 = sbr.rel (%p566) target = $region49
    $region48: #{tpu_custom_call.1} parent=1 // pred_region
      %v569 = vld [vmem:[#allocation2] sm:$0xff]
      %v570 = vld [vmem:[#allocation2 + $0x8] sm:$0xff]
      %v571 = vld [vmem:[#allocation2 + $0x10] sm:$0xff]
      %v572 = vld [vmem:[#allocation2 + $0x18] sm:$0xff]
      %v573 = vld [vmem:[#allocation2 + $0x20] sm:$0xff]
      %v574 = vld [vmem:[#allocation2 + $0x28] sm:$0xff]
      %v575 = vld [vmem:[#allocation2 + $0x30] sm:$0xff]
      %v576 = vld [vmem:[#allocation2 + $0x38] sm:$0xff]
      %v577 = vld [vmem:[#allocation2 + $0x40] sm:$0xff]
      %v578 = vld [vmem:[#allocation2 + $0x48] sm:$0xff]
      %v579 = vld [vmem:[#allocation2 + $0x50] sm:$0xff]
      %v580 = vld [vmem:[#allocation2 + $0x58] sm:$0xff]
      %v581 = vld [vmem:[#allocation2 + $0x60] sm:$0xff]
      %v582 = vld [vmem:[#allocation2 + $0x68] sm:$0xff]
      %v583 = vld [vmem:[#allocation2 + $0x70] sm:$0xff]
      %v584 = vld [vmem:[#allocation2 + $0x78] sm:$0xff]
      %v585 = vadd.f32 %v88, %v569
      %v586 = vadd.f32 %v89, %v570
      %v587 = vadd.f32 %v90, %v571
      %v588 = vadd.f32 %v91, %v572
      %v589 = vadd.f32 %v92, %v573
      %v590 = vadd.f32 %v93, %v574
      %v591 = vadd.f32 %v94, %v575
      %v592 = vadd.f32 %v95, %v576
      %v593 = vadd.f32 %v96, %v577
      %v594 = vadd.f32 %v97, %v578
      %v595 = vadd.f32 %v98, %v579
      %v596 = vadd.f32 %v99, %v580
      %v597 = vadd.f32 %v100, %v581
      %v598 = vadd.f32 %v101, %v582
      %v599 = vadd.f32 %v102, %v583
      %v600 = vadd.f32 %v103, %v584
      %v601 = vld [vmem:[%s4] sm:$0x1]
      %v603 = vlaneseq
      %v604 = vshrl.u32 %v603, 7
      %v605 = vsub.s32 0, %v604
      %v606 = vrot.slane %v601, %v605
      %v608 = vadd.f32 %v585, %v606
      %v609 = vadd.f32 %v586, %v606
      %v610 = vadd.f32 %v587, %v606
      %v611 = vadd.f32 %v588, %v606
      %v612 = vadd.f32 %v589, %v606
      %v613 = vadd.f32 %v590, %v606
      %v614 = vadd.f32 %v591, %v606
      %v615 = vadd.f32 %v592, %v606
      %v616 = vadd.f32 %v593, %v606
      %v617 = vadd.f32 %v594, %v606
      %v618 = vadd.f32 %v595, %v606
      %v619 = vadd.f32 %v596, %v606
      %v620 = vadd.f32 %v597, %v606
      %v621 = vadd.f32 %v598, %v606
      %v622 = vadd.f32 %v599, %v606
      %v623 = vadd.f32 %v600, %v606
      %624 = vadd.xlane.f32.xlu0 %v608
      %v625 = vpop.xlane.xlu0 %624
      %626 = vadd.xlane.f32.xlu0 %v609
      %v627 = vpop.xlane.xlu0 %626
      %628 = vadd.xlane.f32.xlu0 %v610
      %v629 = vpop.xlane.xlu0 %628
      %630 = vadd.xlane.f32.xlu0 %v611
      %v631 = vpop.xlane.xlu0 %630
      %632 = vadd.xlane.f32.xlu0 %v612
      %v633 = vpop.xlane.xlu0 %632
      %634 = vadd.xlane.f32.xlu0 %v613
      %v635 = vpop.xlane.xlu0 %634
      %636 = vadd.xlane.f32.xlu0 %v614
      %v637 = vpop.xlane.xlu0 %636
      %638 = vadd.xlane.f32.xlu0 %v615
      %v639 = vpop.xlane.xlu0 %638
      %640 = vadd.xlane.f32.xlu0 %v616
      %v641 = vpop.xlane.xlu0 %640
      %642 = vadd.xlane.f32.xlu0 %v617
      %v643 = vpop.xlane.xlu0 %642
      %644 = vadd.xlane.f32.xlu0 %v618
      %v645 = vpop.xlane.xlu0 %644
      %646 = vadd.xlane.f32.xlu0 %v619
      %v647 = vpop.xlane.xlu0 %646
      %648 = vadd.xlane.f32.xlu0 %v620
      %v649 = vpop.xlane.xlu0 %648
      %650 = vadd.xlane.f32.xlu0 %v621
      %v651 = vpop.xlane.xlu0 %650
      %652 = vadd.xlane.f32.xlu0 %v622
      %v653 = vpop.xlane.xlu0 %652
      %654 = vadd.xlane.f32.xlu0 %v623
      %v655 = vpop.xlane.xlu0 %654
      %v656 = vmul.f32 %v625, 0.03125
      %v657 = vmul.f32 %v627, 0.03125
      %v658 = vmul.f32 %v629, 0.03125
      %v659 = vmul.f32 %v631, 0.03125
      %v660 = vmul.f32 %v633, 0.03125
      %v661 = vmul.f32 %v635, 0.03125
      %v662 = vmul.f32 %v637, 0.03125
      %v663 = vmul.f32 %v639, 0.03125
      %v664 = vmul.f32 %v641, 0.03125
      %v665 = vmul.f32 %v643, 0.03125
      %v666 = vmul.f32 %v645, 0.03125
      %v667 = vmul.f32 %v647, 0.03125
      %v668 = vmul.f32 %v649, 0.03125
      %v669 = vmul.f32 %v651, 0.03125
      %v670 = vmul.f32 %v653, 0.03125
      %v671 = vmul.f32 %v655, 0.03125
      %v672 = vsub.f32 %v608, %v656
      %v673 = vsub.f32 %v609, %v657
      %v674 = vsub.f32 %v610, %v658
      %v675 = vsub.f32 %v611, %v659
      %v676 = vsub.f32 %v612, %v660
      %v677 = vsub.f32 %v613, %v661
      %v678 = vsub.f32 %v614, %v662
      %v679 = vsub.f32 %v615, %v663
      %v680 = vsub.f32 %v616, %v664
      %v681 = vsub.f32 %v617, %v665
      %v682 = vsub.f32 %v618, %v666
      %v683 = vsub.f32 %v619, %v667
      %v684 = vsub.f32 %v620, %v668
      %v685 = vsub.f32 %v621, %v669
      %v686 = vsub.f32 %v622, %v670
      %v687 = vsub.f32 %v623, %v671
      %v688 = vlaneseq
      %v689 = vand.u32 %v688, 127
      %vm690 = vcmp.lt.s32.totalorder %v689, 32
      %v691 = vsel %vm690, 1, 0
      %vm692 = vcmp.eq.s32.totalorder %v691, 1
      %v693 = vsel %vm692, %v672, 0.0
      %v694 = vsel %vm692, %v673, 0.0
      %v695 = vsel %vm692, %v674, 0.0
      %v696 = vsel %vm692, %v675, 0.0
      %v697 = vsel %vm692, %v676, 0.0
      %v698 = vsel %vm692, %v677, 0.0
      %v699 = vsel %vm692, %v678, 0.0
      %v700 = vsel %vm692, %v679, 0.0
      %v701 = vsel %vm692, %v680, 0.0
      %v702 = vsel %vm692, %v681, 0.0
      %v703 = vsel %vm692, %v682, 0.0
      %v704 = vsel %vm692, %v683, 0.0
      %v705 = vsel %vm692, %v684, 0.0
      %v706 = vsel %vm692, %v685, 0.0
      %v707 = vsel %vm692, %v686, 0.0
      %v708 = vsel %vm692, %v687, 0.0
      %v709 = vmul.f32 %v693, %v693
      %v710 = vmul.f32 %v694, %v694
      %v711 = vmul.f32 %v695, %v695
      %v712 = vmul.f32 %v696, %v696
      %v713 = vmul.f32 %v697, %v697
      %v714 = vmul.f32 %v698, %v698
      %v715 = vmul.f32 %v699, %v699
      %v716 = vmul.f32 %v700, %v700
      %v717 = vmul.f32 %v701, %v701
      %v718 = vmul.f32 %v702, %v702
      %v719 = vmul.f32 %v703, %v703
      %v720 = vmul.f32 %v704, %v704
      %v721 = vmul.f32 %v705, %v705
      %v722 = vmul.f32 %v706, %v706
      %v723 = vmul.f32 %v707, %v707
      %v724 = vmul.f32 %v708, %v708
      %725 = vadd.xlane.f32.xlu0 %v709
      %v726 = vpop.xlane.xlu0 %725
      %727 = vadd.xlane.f32.xlu0 %v710
      %v728 = vpop.xlane.xlu0 %727
      %729 = vadd.xlane.f32.xlu0 %v711
      %v730 = vpop.xlane.xlu0 %729
      %731 = vadd.xlane.f32.xlu0 %v712
      %v732 = vpop.xlane.xlu0 %731
      %733 = vadd.xlane.f32.xlu0 %v713
      %v734 = vpop.xlane.xlu0 %733
      %735 = vadd.xlane.f32.xlu0 %v714
      %v736 = vpop.xlane.xlu0 %735
      %737 = vadd.xlane.f32.xlu0 %v715
      %v738 = vpop.xlane.xlu0 %737
      %739 = vadd.xlane.f32.xlu0 %v716
      %v740 = vpop.xlane.xlu0 %739
      %741 = vadd.xlane.f32.xlu0 %v717
      %v742 = vpop.xlane.xlu0 %741
      %743 = vadd.xlane.f32.xlu0 %v718
      %v744 = vpop.xlane.xlu0 %743
      %745 = vadd.xlane.f32.xlu0 %v719
      %v746 = vpop.xlane.xlu0 %745
      %747 = vadd.xlane.f32.xlu0 %v720
      %v748 = vpop.xlane.xlu0 %747
      %749 = vadd.xlane.f32.xlu0 %v721
      %v750 = vpop.xlane.xlu0 %749
      %751 = vadd.xlane.f32.xlu0 %v722
      %v752 = vpop.xlane.xlu0 %751
      %753 = vadd.xlane.f32.xlu0 %v723
      %v754 = vpop.xlane.xlu0 %753
      %755 = vadd.xlane.f32.xlu0 %v724
      %v756 = vpop.xlane.xlu0 %755
      %v757 = vmul.f32 %v726, 0.03125
      %v758 = vmul.f32 %v728, 0.03125
      %v759 = vmul.f32 %v730, 0.03125
      %v760 = vmul.f32 %v732, 0.03125
      %v761 = vmul.f32 %v734, 0.03125
      %v762 = vmul.f32 %v736, 0.03125
      %v763 = vmul.f32 %v738, 0.03125
      %v764 = vmul.f32 %v740, 0.03125
      %v765 = vmul.f32 %v742, 0.03125
      %v766 = vmul.f32 %v744, 0.03125
      %v767 = vmul.f32 %v746, 0.03125
      %v768 = vmul.f32 %v748, 0.03125
      %v769 = vmul.f32 %v750, 0.03125
      %v770 = vmul.f32 %v752, 0.03125
      %v771 = vmul.f32 %v754, 0.03125
      %v772 = vmul.f32 %v756, 0.03125
      %v773 = vadd.f32 %v757, 1e-05
      %v774 = vadd.f32 %v758, 1e-05
      %v775 = vadd.f32 %v759, 1e-05
      %v776 = vadd.f32 %v760, 1e-05
      %v777 = vadd.f32 %v761, 1e-05
      %v778 = vadd.f32 %v762, 1e-05
      %v779 = vadd.f32 %v763, 1e-05
      %v780 = vadd.f32 %v764, 1e-05
      %v781 = vadd.f32 %v765, 1e-05
      %v782 = vadd.f32 %v766, 1e-05
      %v783 = vadd.f32 %v767, 1e-05
      %v784 = vadd.f32 %v768, 1e-05
      %v785 = vadd.f32 %v769, 1e-05
      %v786 = vadd.f32 %v770, 1e-05
      %v787 = vadd.f32 %v771, 1e-05
      %v788 = vadd.f32 %v772, 1e-05
      %v789 = vrsqrt.pop %v773
      %v790 = vrsqrt.pop %v774
      %v791 = vrsqrt.pop %v775
      %v792 = vrsqrt.pop %v776
      %v793 = vrsqrt.pop %v777
      %v794 = vrsqrt.pop %v778
      %v795 = vrsqrt.pop %v779
      %v796 = vrsqrt.pop %v780
      %v797 = vrsqrt.pop %v781
      %v798 = vrsqrt.pop %v782
      %v799 = vrsqrt.pop %v783
      %v800 = vrsqrt.pop %v784
      %v801 = vrsqrt.pop %v785
      %v802 = vrsqrt.pop %v786
      %v803 = vrsqrt.pop %v787
      %v804 = vrsqrt.pop %v788
      %v805 = vmul.f32 %v693, %v789
      %v806 = vmul.f32 %v694, %v790
      %v807 = vmul.f32 %v695, %v791
      %v808 = vmul.f32 %v696, %v792
      %v809 = vmul.f32 %v697, %v793
      %v810 = vmul.f32 %v698, %v794
      %v811 = vmul.f32 %v699, %v795
      %v812 = vmul.f32 %v700, %v796
      %v813 = vmul.f32 %v701, %v797
      %v814 = vmul.f32 %v702, %v798
      %v815 = vmul.f32 %v703, %v799
      %v816 = vmul.f32 %v704, %v800
      %v817 = vmul.f32 %v705, %v801
      %v818 = vmul.f32 %v706, %v802
      %v819 = vmul.f32 %v707, %v803
      %v820 = vmul.f32 %v708, %v804
      %v821 = vld [vmem:[%s5] sm:$0x1]
      %v823 = vlaneseq
      %v824 = vshrl.u32 %v823, 7
      %v825 = vsub.s32 0, %v824
      %v826 = vrot.slane %v821, %v825
      %v828 = vmul.f32 %v805, %v826
      %v829 = vmul.f32 %v806, %v826
      %v830 = vmul.f32 %v807, %v826
      %v831 = vmul.f32 %v808, %v826
      %v832 = vmul.f32 %v809, %v826
      %v833 = vmul.f32 %v810, %v826
      %v834 = vmul.f32 %v811, %v826
      %v835 = vmul.f32 %v812, %v826
      %v836 = vmul.f32 %v813, %v826
      %v837 = vmul.f32 %v814, %v826
      %v838 = vmul.f32 %v815, %v826
      %v839 = vmul.f32 %v816, %v826
      %v840 = vmul.f32 %v817, %v826
      %v841 = vmul.f32 %v818, %v826
      %v842 = vmul.f32 %v819, %v826
      %v843 = vmul.f32 %v820, %v826
      %v844 = vld [vmem:[%s6] sm:$0x1]
      %v846 = vlaneseq
      %v847 = vshrl.u32 %v846, 7
      %v848 = vsub.s32 0, %v847
      %v849 = vrot.slane %v844, %v848
      %v851 = vadd.f32 %v828, %v849
      %v852 = vadd.f32 %v829, %v849
      %v853 = vadd.f32 %v830, %v849
      %v854 = vadd.f32 %v831, %v849
      %v855 = vadd.f32 %v832, %v849
      %v856 = vadd.f32 %v833, %v849
      %v857 = vadd.f32 %v834, %v849
      %v858 = vadd.f32 %v835, %v849
      %v859 = vadd.f32 %v836, %v849
      %v860 = vadd.f32 %v837, %v849
      %v861 = vadd.f32 %v838, %v849
      %v862 = vadd.f32 %v839, %v849
      %v863 = vadd.f32 %v840, %v849
      %v864 = vadd.f32 %v841, %v849
      %v865 = vadd.f32 %v842, %v849
      %v866 = vadd.f32 %v843, %v849
      %867 = vst [vmem:[#allocation9] sm:$0xff] %v851
      %868 = vst [vmem:[#allocation9 + $0x8] sm:$0xff] %v852
      %869 = vst [vmem:[#allocation9 + $0x10] sm:$0xff] %v853
      %870 = vst [vmem:[#allocation9 + $0x18] sm:$0xff] %v854
      %871 = vst [vmem:[#allocation9 + $0x20] sm:$0xff] %v855
      %872 = vst [vmem:[#allocation9 + $0x28] sm:$0xff] %v856
      %873 = vst [vmem:[#allocation9 + $0x30] sm:$0xff] %v857
      %874 = vst [vmem:[#allocation9 + $0x38] sm:$0xff] %v858
      %875 = vst [vmem:[#allocation9 + $0x40] sm:$0xff] %v859
      %876 = vst [vmem:[#allocation9 + $0x48] sm:$0xff] %v860
      %877 = vst [vmem:[#allocation9 + $0x50] sm:$0xff] %v861
      %878 = vst [vmem:[#allocation9 + $0x58] sm:$0xff] %v862
      %879 = vst [vmem:[#allocation9 + $0x60] sm:$0xff] %v863
      %880 = vst [vmem:[#allocation9 + $0x68] sm:$0xff] %v864
      %881 = vst [vmem:[#allocation9 + $0x70] sm:$0xff] %v865
      %882 = vst [vmem:[#allocation9 + $0x78] sm:$0xff] %v866
    $region49: #{tpu_custom_call.1} parent=1 // pred_fallthru
      _
    // Predicated region
    $region50: #{tpu_custom_call.1} parent=1 // pred_check
      _
    $region51: #{tpu_custom_call.1} parent=1 // pred_check_branch
      %884 = sbr.rel (0) target = $region53
    $region52: #{tpu_custom_call.1} parent=1 // pred_region
      %s886 = ssub.s32 2048, 2048
      %887 = vsyncadd [#allocation5], %s886
      %s888 = sshll.u32 [#allocation9], 4
      %s889 = int_to_ptr.vmem [resolvable:$true] %s888
      %894 = dma.vmem_to_hbm [thread:$0]  %s889, 2048, %s7, [#allocation5], 128, 128, 8
    $region53: #{tpu_custom_call.1} parent=1 // pred_fallthru
      _
    // Predicated region
    $region54: #{tpu_custom_call.1} parent=1 // pred_check
      _
    $region55: #{tpu_custom_call.1} parent=1 // pred_check_branch
      %896 = sbr.rel (0) target = $region57
    $region56: #{tpu_custom_call.1} parent=1 // pred_region
      %897 = dma.done [#allocation5], 2048
    $region57: #{tpu_custom_call.1} parent=1 // pred_fallthru
      _
    %898 = vsyncpa [#allocation4], 1
    %899 = vsyncpa [#allocation7], 1
    %900 = vsyncpa [#allocation5], 1

</llo_original>
